<compile_context>
chip_gen: v7x
topology: tpu7x:2x2x1
jax: 0.10.0
libtpu: 0.0.40
codegen_flags: <defaults>
</compile_context>

<pallas_src>
import functools

import jax
import jax.numpy as jnp
from jax.experimental import pallas as pl
from jax.experimental.pallas import tpu as pltpu


def _round_up(n, m):
    return ((n + m - 1) // m) * m


def _pick_ti(intermediate):
    """Pick an I-tile that divides I and keeps 2*ti a multiple of 128."""
    for cand in (1024, 512, 256, 128, 64):
        if intermediate % cand == 0:
            return cand
    return intermediate  # fall back to full I (block == full dims, always legal)


def _mlp_kernel(x_ref, guw_ref, dw_ref, o_ref, acc_ref):
    k = pl.program_id(1)

    @pl.when(k == 0)
    def _init():
        acc_ref[...] = jnp.zeros_like(acc_ref)

    x = x_ref[...]                                               # (tm, H)
    # Single fused gate+up matmul for this I-slice -> (tm, 2*ti) in f32.
    gu = jnp.dot(x, guw_ref[...], preferred_element_type=jnp.float32)
    ti = guw_ref.shape[1] // 2
    g = gu[:, :ti]
    u = gu[:, ti:]
    # SiLU(gate) * up, kept in f32 (VPU + EUP path; no bf16 elementwise).
    h = (g * jax.nn.sigmoid(g)) * u                              # (tm, ti) f32

    acc_ref[...] += jnp.dot(h.astype(dw_ref.dtype), dw_ref[...],
                            preferred_element_type=jnp.float32)  # (tm, H) f32

    @pl.when(k == pl.num_programs(1) - 1)
    def _store():
        o_ref[...] = acc_ref[...].astype(o_ref.dtype)


def tpi_llama_mlp(x, gate_w, up_w, down_w, *, tm=None, ti=None,
                  compute_dtype=None):
    """x: [M, H]; gate_w/up_w: [H, I]; down_w: [I, H].  Returns [M, H]."""
    M, H = x.shape
    Hg, I = gate_w.shape
    assert Hg == H and up_w.shape == (H, I) and down_w.shape == (I, H)
    out_dtype = x.dtype

    # Optional low-precision MXU operands (bf16 on v5e/v6e/v7x); accumulation
    # stays f32 via preferred_element_type inside the kernel.
    if compute_dtype is not None:
        x = x.astype(compute_dtype)
        gate_w = gate_w.astype(compute_dtype)
        up_w = up_w.astype(compute_dtype)
        down_w = down_w.astype(compute_dtype)

    # --- token (M) tiling: multiple of 8, >= 2 grid steps when possible ----
    if tm is None:
        tm = 256
    tm = min(tm, _round_up(M, 8))
    tm = _round_up(tm, 8)
    if M > 8 and pl.cdiv(M, tm) < 2:
        tm = max(8, _round_up(pl.cdiv(M, 2), 8))
    n_m = pl.cdiv(M, tm)
    m_pad = n_m * tm
    if m_pad != M:
        # Zero padding is safe: silu(0) * (x@up) on zero rows stays finite.
        x = jnp.pad(x, ((0, m_pad - M), (0, 0)))

    # --- intermediate (I) tiling + fused gate/up operand --------------------
    if ti is None:
        ti = _pick_ti(I)
    assert I % ti == 0, "ti must divide the intermediate size"
    nk = I // ti
    # Per-tile interleave so block k of width 2*ti is [gate_k | up_k].
    gu_w = jnp.concatenate(
        [gate_w.reshape(H, nk, ti), up_w.reshape(H, nk, ti)], axis=-1
    ).reshape(H, nk * 2 * ti)

    # --- VMEM budget / cost hints -------------------------------------------
    in_isize = jnp.dtype(x.dtype).itemsize
    out_isize = jnp.dtype(out_dtype).itemsize
    tile_bytes = (2 * (tm * H + H * 2 * ti + ti * H) * in_isize   # dbl-buffered ins
                  + 2 * tm * H * out_isize                        # dbl-buffered out
                  + tm * H * 4)                                   # f32 accumulator
    vmem_limit = int(min(max(tile_bytes * 3 // 2 + (4 << 20), 8 << 20), 96 << 20))

    cost = pl.CostEstimate(
        flops=6 * M * H * I + 4 * M * I,
        transcendentals=M * I,
        bytes_accessed=(M * H + 2 * H * I + I * H) * in_isize + M * H * out_isize,
    )

    grid = (n_m, nk)
    out = pl.pallas_call(
        _mlp_kernel,
        out_shape=jax.ShapeDtypeStruct((m_pad, H), out_dtype),
        grid_spec=pltpu.PrefetchScalarGridSpec(
            num_scalar_prefetch=0,
            grid=grid,
            in_specs=[
                pl.BlockSpec((tm, H), lambda i, k: (i, 0)),       # x tile
                pl.BlockSpec((H, 2 * ti), lambda i, k: (0, k)),   # fused gate|up slice
                pl.BlockSpec((ti, H), lambda i, k: (k, 0)),       # down slice
            ],
            out_specs=pl.BlockSpec((tm, H), lambda i, k: (i, 0)),
            scratch_shapes=[pltpu.VMEM((tm, H), jnp.float32)],    # down-proj accumulator
        ),
        compiler_params=pltpu.CompilerParams(
            dimension_semantics=("parallel", "arbitrary"),
            vmem_limit_bytes=vmem_limit,
        ),
        cost_estimate=cost,
    )(x, gu_w, down_w)
    return out[:M]


def _reference(x, gate_w, up_w, down_w):
    g = x @ gate_w
    u = x @ up_w
    return (jax.nn.silu(g) * u) @ down_w


if __name__ == "__main__":
    # Small, module-consistent shapes (this rank's shard of the MLP).
    batch, seq = 2, 8
    hidden_size = 32          # config.hidden_size
    split_dim = 64            # per-rank intermediate_size

    key = jax.random.PRNGKey(0)
    kx, kg, ku, kd = jax.random.split(key, 4)

    x = jax.random.normal(kx, (batch, seq, hidden_size), dtype=jnp.float32)

    # Deterministic "nn.Linear"-like init, stored transposed so kernel does x @ W.
    gate_w = jax.random.uniform(kg, (hidden_size, split_dim), jnp.float32,
                                -1.0, 1.0) / jnp.sqrt(hidden_size)
    up_w = jax.random.uniform(ku, (hidden_size, split_dim), jnp.float32,
                              -1.0, 1.0) / jnp.sqrt(hidden_size)
    down_w = jax.random.uniform(kd, (split_dim, hidden_size), jnp.float32,
                                -1.0, 1.0) / jnp.sqrt(split_dim)

    x2d = x.reshape(batch * seq, hidden_size)   # token-flatten in plain JAX
    ref = _reference(x2d, gate_w, up_w, down_w)

    # 1) f32 path, tm=8 => 2 M-tiles (pipelining / megacore engages), tight check.
    out = tpi_llama_mlp(x2d, gate_w, up_w, down_w, tm=8)
    jax.block_until_ready(out)
    assert jnp.allclose(out, ref, atol=1e-5, rtol=1e-5), "f32 mismatch vs reference"

    # 2) ragged M (exercises the zero-padding path and auto tile pick).
    out_ragged = tpi_llama_mlp(x2d[:13], gate_w, up_w, down_w)
    jax.block_until_ready(out_ragged)
    assert jnp.allclose(out_ragged, ref[:13], atol=1e-5, rtol=1e-5), \
        "ragged-M mismatch vs reference"

    # 3) bf16 MXU operands with f32 accumulation (looser tolerance).
    out_bf16 = tpi_llama_mlp(x2d, gate_w, up_w, down_w, tm=8,
                             compute_dtype=jnp.bfloat16)
    jax.block_until_ready(out_bf16)
    assert jnp.allclose(out_bf16.astype(jnp.float32), ref,
                        atol=1e-1, rtol=1e-1), "bf16 mismatch vs reference"

    out3d = out.reshape(batch, seq, hidden_size)
    jax.block_until_ready(out3d)
    print("KERNEL_OK")
</pallas_src>

<mosaic_0001>
module attributes {stable_mosaic.version = 11 : i64} {
  func.func @_mlp_kernel(%arg0: i32, %arg1: i32, %arg2: memref<8x32xf32, #tpu.memory_space<vmem>>, %arg3: memref<32x128xf32, #tpu.memory_space<vmem>>, %arg4: memref<64x32xf32, #tpu.memory_space<vmem>>, %arg5: memref<8x32xf32, #tpu.memory_space<vmem>>, %arg6: memref<8x32xf32, #tpu.memory_space<vmem>>) attributes {dimension_semantics = [#tpu.dimension_semantics<parallel>, #tpu.dimension_semantics<arbitrary>], iteration_bounds = array<i64: 2, 1>, scalar_prefetch = 0 : i64, scratch_operands = 1 : i64, tpu.core_type = #tpu.core_type<tc>, window_params = [{transform_indices = @transform_0, window_bounds = array<i64: 8, 32>}, {transform_indices = @transform_1, window_bounds = array<i64: 32, 128>}, {transform_indices = @transform_2, window_bounds = array<i64: 64, 32>}, {transform_indices = @transform_3, window_bounds = array<i64: 8, 32>}]} {
    %c0_i32 = arith.constant 0 : i32
    %0 = arith.cmpi eq, %arg1, %c0_i32 : i32
    %1 = arith.extui %0 : i1 to i32
    %c0_i32_0 = arith.constant 0 : i32
    %2 = arith.cmpi ne, %1, %c0_i32_0 : i32
    scf.if %2 {
      %cst_14 = arith.constant 0.000000e+00 : f32
      %23 = vector.broadcast %cst_14 : f32 to vector<8x32xf32>
      %c0_15 = arith.constant 0 : index
      %c0_16 = arith.constant 0 : index
      %24 = vector.load %arg6[%c0_15, %c0_16] : memref<8x32xf32, #tpu.memory_space<vmem>>, vector<8x32xf32>
      tpu.vector_store %arg6[%c0_15, %c0_16], %23 {strides = array<i32>} : memref<8x32xf32, #tpu.memory_space<vmem>>, vector<8x32xf32>,
    } else {
    }
    %c0 = arith.constant 0 : index
    %c0_1 = arith.constant 0 : index
    %3 = vector.load %arg2[%c0, %c0_1] : memref<8x32xf32, #tpu.memory_space<vmem>>, vector<8x32xf32>
    %c0_2 = arith.constant 0 : index
    %c0_3 = arith.constant 0 : index
    %4 = vector.load %arg3[%c0_2, %c0_3] : memref<32x128xf32, #tpu.memory_space<vmem>>, vector<32x128xf32>
    %cst = arith.constant dense<0.000000e+00> : vector<8x128xf32>
    %5 = tpu.matmul %3, %4, %cst {dimension_numbers = #tpu.dot_dimension_numbers<[1], [0], [0], [1], [0, 0, 1, 1], [], []>} : vector<8x32xf32>, vector<32x128xf32>, vector<8x128xf32> -> vector<8x128xf32>
    %6 = vector.extract_strided_slice %5 {offsets = [0, 0], sizes = [8, 64], strides = [1, 1]} : vector<8x128xf32> to vector<8x64xf32>
    %7 = vector.extract_strided_slice %5 {offsets = [0, 64], sizes = [8, 64], strides = [1, 1]} : vector<8x128xf32> to vector<8x64xf32>
    %8 = arith.negf %6 : vector<8x64xf32>
    %9 = math.exp %8 : vector<8x64xf32>
    %cst_4 = arith.constant 1.000000e+00 : f32
    %10 = vector.broadcast %cst_4 : f32 to vector<8x64xf32>
    %11 = arith.addf %10, %9 : vector<8x64xf32>
    %12 = arith.divf %10, %11 : vector<8x64xf32>
    %13 = arith.mulf %6, %12 : vector<8x64xf32>
    %14 = arith.mulf %13, %7 : vector<8x64xf32>
    %c0_5 = arith.constant 0 : index
    %c0_6 = arith.constant 0 : index
    %15 = vector.load %arg6[%c0_5, %c0_6] : memref<8x32xf32, #tpu.memory_space<vmem>>, vector<8x32xf32>
    %c0_7 = arith.constant 0 : index
    %c0_8 = arith.constant 0 : index
    %16 = vector.load %arg4[%c0_7, %c0_8] : memref<64x32xf32, #tpu.memory_space<vmem>>, vector<64x32xf32>
    %cst_9 = arith.constant dense<0.000000e+00> : vector<8x32xf32>
    %17 = tpu.matmul %14, %16, %cst_9 {dimension_numbers = #tpu.dot_dimension_numbers<[1], [0], [0], [1], [0, 0, 1, 1], [], []>} : vector<8x64xf32>, vector<64x32xf32>, vector<8x32xf32> -> vector<8x32xf32>
    %18 = arith.addf %15, %17 : vector<8x32xf32>
    %c0_10 = arith.constant 0 : index
    %c0_11 = arith.constant 0 : index
    %19 = vector.load %arg6[%c0_10, %c0_11] : memref<8x32xf32, #tpu.memory_space<vmem>>, vector<8x32xf32>
    tpu.vector_store %arg6[%c0_10, %c0_11], %18 {strides = array<i32>} : memref<8x32xf32, #tpu.memory_space<vmem>>, vector<8x32xf32>,
    %c0_i32_12 = arith.constant 0 : i32
    %20 = arith.cmpi eq, %arg1, %c0_i32_12 : i32
    %21 = arith.extui %20 : i1 to i32
    %c0_i32_13 = arith.constant 0 : i32
    %22 = arith.cmpi ne, %21, %c0_i32_13 : i32
    scf.if %22 {
      %c0_14 = arith.constant 0 : index
      %c0_15 = arith.constant 0 : index
      %23 = vector.load %arg6[%c0_14, %c0_15] : memref<8x32xf32, #tpu.memory_space<vmem>>, vector<8x32xf32>
      %c0_16 = arith.constant 0 : index
      %c0_17 = arith.constant 0 : index
      %24 = vector.load %arg5[%c0_16, %c0_17] : memref<8x32xf32, #tpu.memory_space<vmem>>, vector<8x32xf32>
      tpu.vector_store %arg5[%c0_16, %c0_17], %23 {strides = array<i32>} : memref<8x32xf32, #tpu.memory_space<vmem>>, vector<8x32xf32>,
    } else {
    }
    return
  }
  func.func @transform_0(%arg0: i32, %arg1: i32) -> (i32, i32) {
    %c0_i32 = arith.constant 0 : i32
    %c0_i32_0 = arith.constant 0 : i32
    return %arg0, %c0_i32 : i32, i32
  }
  func.func @transform_1(%arg0: i32, %arg1: i32) -> (i32, i32) {
    %c0_i32 = arith.constant 0 : i32
    %c0_i32_0 = arith.constant 0 : i32
    return %c0_i32, %arg1 : i32, i32
  }
  func.func @transform_2(%arg0: i32, %arg1: i32) -> (i32, i32) {
    %c0_i32 = arith.constant 0 : i32
    %c0_i32_0 = arith.constant 0 : i32
    return %arg1, %c0_i32 : i32, i32
  }
  func.func @transform_3(%arg0: i32, %arg1: i32) -> (i32, i32) {
    %c0_i32 = arith.constant 0 : i32
    %c0_i32_0 = arith.constant 0 : i32
    return %arg0, %c0_i32 : i32, i32
  }
}

</mosaic_0001>

<llo_original>
// kernel: tpu_custom_call.1
$region0: #{tpu_custom_call.1}
  #allocation0 [shape = 'u32[]', space=smem, size = 0x4, offset = 0x4, fixed_abs, tag = 'smem constant byte address 0x4 - core index']
  #allocation1 [shape = 'u32[144,128]{1,0:T(1,128)}', space=vmem, size = 0x12000, scoped, tag = 'internal scratch']
  #allocation2 [shape = 'f32[8,32]{1,0:T(8,128)}', space=vmem, size = 0x1000, scoped, tag = 'scratch operand']
  %s0 = inlined_call_operand.vmem [shape: f32[16,32], index: 0, kind: input, shape index: {}]
  %s1 = inlined_call_operand.vmem [shape: f32[32,128], index: 1, kind: input, shape index: {}]
  %s2 = inlined_call_operand.vmem [shape: f32[64,32], index: 2, kind: input, shape index: {}]
  %s3 = inlined_call_operand.hbm [shape: f32[16,32], index: 3, kind: output, shape index: {}]
  %s4 = sld [smem:[#allocation0]]
  $region53: #{tpu_custom_call.1} parent=0
    _
  %s6 = ssub.s32 1, %s4
  %s7 = scalar_select 0, %s6, %s4
  $region1: #{tpu_custom_call.1} parent=0
    #allocation3 [shape = 'u8[8192]{0}', space=vmem, size = 0x2000, scoped, tag = 'output window, operand 0']
    #allocation4 [shape = 's32[2]{0}', space=sflag, size = 0x8, scoped, tag = 'scoped memory for tpu_custom_call.1']
    %8 = vsyncpa [#allocation4], 0
    %s9 = scalar_lea.sflag [#allocation4], 1
    %10 = vsyncpa %s9, 0
    loop: start=0, step=1, limit=4
    $region2: #{tpu_custom_call.1} parent=1 // loop_pre_header
      _
    $region3: #{tpu_custom_call.1} parent=1 // loop_header
      %s12 = sphi 0, %s16
      %p13 = scmp.ge.s32.totalorder %s12, 4
      %s19 = sphi 0, %s31
      %s20 = sphi 0, %s27
      %s21 = sphi 0, %s19
      %s22 = sphi 0, %s20
      %s23 = sphi 0, %s21
      %s24 = sphi 0, %s22
      %s34 = sphi 0, %s36
      %s37 = sphi 0, %s34
      %s38 = sphi 0, %s37
      %s54 = sphi 0, %s38
      %s60 = sphi 0, %s62
      %s63 = sphi 0, %s60
      %s64 = sphi 0, %s63
      %s80 = sphi 0, %s64
      %s86 = sphi 0, %s88
      %s89 = sphi 0, %s86
      %s90 = sphi 0, %s89
      %s106 = sphi 0, %s90
      %s112 = sphi 0, %s114
      %s115 = sphi 0, %s112
      %s116 = sphi 0, %s115
      %s132 = sphi 0, %s116
    $region4: #{tpu_custom_call.1} parent=1 // loop_header_branch
      %15 = sbr.rel (%p13) target = $region8
    $region5: #{tpu_custom_call.1} parent=1 // loop_body
      %s17 = ssub.s32 %s12, 1
      %s18 = ssub.s32 %s12, 2
      %s25 = sadd.s32 1, %s20
      %p26 = scmp.ge.s32.totalorder %s25, 1
      %s27 = scalar_select %p26, 0, %s25
      %s28 = sadd.s32 1, %s19
      %s29 = scalar_select %p26, %s28, %s19
      %p30 = scmp.ge.s32.totalorder %s29, 2
      %s31 = scalar_select %p30, 0, %s29
      %s32 = ssub.s32 %s19, %s31
      %p33 = scmp.eq.s32.totalorder %s32, 0
      %s35 = sadd.s32 %s34, 1
      %s36 = scalar_select %p33, %s34, %s35
      %p39 = pneg %p33
      %p40 = scmp.eq.s32.totalorder %s12, 1
      %p41 = por %p39, %p40
      %p42 = scmp.ne.s32.totalorder %s34, %s37
      %p43 = scmp.eq.s32.totalorder %s12, 0
      %p44 = por %p42, %p43
      %p45 = scmp.ne.s32.totalorder %s34, %s37
      %p46 = scmp.eq.s32.totalorder %s17, 1
      %p47 = por %p45, %p46
      %p48 = scmp.ne.s32.totalorder %s37, %s38
      %p49 = scmp.eq.s32.totalorder %s17, 0
      %p50 = por %p48, %p49
      %p51 = scmp.ne.s32.totalorder %s37, %s38
      %p52 = scmp.eq.s32.totalorder %s18, 1
      %p53 = por %p51, %p52
      %p55 = scmp.ne.s32.totalorder %s38, %s54
      %p56 = scmp.eq.s32.totalorder %s18, 0
      %p57 = por %p55, %p56
      %s58 = ssub.s32 %s20, %s27
      %p59 = scmp.eq.s32.totalorder %s58, 0
      %s61 = sadd.s32 %s60, 1
      %s62 = scalar_select %p59, %s60, %s61
      %p65 = pneg %p59
      %p66 = scmp.eq.s32.totalorder %s12, 1
      %p67 = por %p65, %p66
      %p68 = scmp.ne.s32.totalorder %s60, %s63
      %p69 = scmp.eq.s32.totalorder %s12, 0
      %p70 = por %p68, %p69
      %p71 = scmp.ne.s32.totalorder %s60, %s63
      %p72 = scmp.eq.s32.totalorder %s17, 1
      %p73 = por %p71, %p72
      %p74 = scmp.ne.s32.totalorder %s63, %s64
      %p75 = scmp.eq.s32.totalorder %s17, 0
      %p76 = por %p74, %p75
      %p77 = scmp.ne.s32.totalorder %s63, %s64
      %p78 = scmp.eq.s32.totalorder %s18, 1
      %p79 = por %p77, %p78
      %p81 = scmp.ne.s32.totalorder %s64, %s80
      %p82 = scmp.eq.s32.totalorder %s18, 0
      %p83 = por %p81, %p82
      %s84 = ssub.s32 %s20, %s27
      %p85 = scmp.eq.s32.totalorder %s84, 0
      %s87 = sadd.s32 %s86, 1
      %s88 = scalar_select %p85, %s86, %s87
      %p91 = pneg %p85
      %p92 = scmp.eq.s32.totalorder %s12, 1
      %p93 = por %p91, %p92
      %p94 = scmp.ne.s32.totalorder %s86, %s89
      %p95 = scmp.eq.s32.totalorder %s12, 0
      %p96 = por %p94, %p95
      %p97 = scmp.ne.s32.totalorder %s86, %s89
      %p98 = scmp.eq.s32.totalorder %s17, 1
      %p99 = por %p97, %p98
      %p100 = scmp.ne.s32.totalorder %s89, %s90
      %p101 = scmp.eq.s32.totalorder %s17, 0
      %p102 = por %p100, %p101
      %p103 = scmp.ne.s32.totalorder %s89, %s90
      %p104 = scmp.eq.s32.totalorder %s18, 1
      %p105 = por %p103, %p104
      %p107 = scmp.ne.s32.totalorder %s90, %s106
      %p108 = scmp.eq.s32.totalorder %s18, 0
      %p109 = por %p107, %p108
      %s110 = ssub.s32 %s19, %s31
      %p111 = scmp.eq.s32.totalorder %s110, 0
      %s113 = sadd.s32 %s112, 1
      %s114 = scalar_select %p111, %s112, %s113
      %p117 = pneg %p111
      %p118 = scmp.eq.s32.totalorder %s12, 1
      %p119 = por %p117, %p118
      %p120 = scmp.ne.s32.totalorder %s112, %s115
      %p121 = scmp.eq.s32.totalorder %s12, 0
      %p122 = por %p120, %p121
      %p123 = scmp.ne.s32.totalorder %s112, %s115
      %p124 = scmp.eq.s32.totalorder %s17, 1
      %p125 = por %p123, %p124
      %p126 = scmp.ne.s32.totalorder %s115, %s116
      %p127 = scmp.eq.s32.totalorder %s17, 0
      %p128 = por %p126, %p127
      %p129 = scmp.ne.s32.totalorder %s115, %s116
      %p130 = scmp.eq.s32.totalorder %s18, 1
      %p131 = por %p129, %p130
      %p133 = scmp.ne.s32.totalorder %s116, %s132
      %p134 = scmp.eq.s32.totalorder %s18, 0
      %p135 = por %p133, %p134
      %p136 = scmp.le.s32.totalorder 1, %s12
      %p137 = scmp.lt.s32.totalorder %s12, 3
      %p138 = pnand %p136, %p137
      %p139 = pneg %p138
      // Predicated region
      $region9: #{tpu_custom_call.1} parent=5 // pred_check
        _
      $region10: #{tpu_custom_call.1} parent=5 // pred_check_branch
        %141 = sbr.rel (%p138) target = $region12
      $region11: #{tpu_custom_call.1} parent=5 // pred_region
        %s142 = ssub.s32 %s12, 1
        // Predicated region
        $region13: #{tpu_custom_call.1} parent=11 // pred_check
          %p143 = pneg %p76
        $region14: #{tpu_custom_call.1} parent=11 // pred_check_branch
          %145 = sbr.rel (%p143) target = $region16
        $region15: #{tpu_custom_call.1} parent=11 // pred_region
          %p146 = scmp.lt.s32.totalorder %s22, 0
          %s147 = scalar_select %p146, %s22, 0
          %s148 = smul.addr %s147, 8
          %s149 = scalar_lea.vmem %s1, %s148
        $region16: #{tpu_custom_call.1} parent=11 // pred_fallthru
          _
        // Predicated region
        $region17: #{tpu_custom_call.1} parent=11 // pred_check
          %p150 = pneg %p102
        $region18: #{tpu_custom_call.1} parent=11 // pred_check_branch
          %152 = sbr.rel (%p150) target = $region20
        $region19: #{tpu_custom_call.1} parent=11 // pred_region
          %s153 = smul.u32 8, %s22
          %p154 = scmp.lt.s32.totalorder %s153, 7
          %s155 = scalar_select %p154, %s153, 7
          %s156 = smul.addr %s155, 8
          %s157 = scalar_lea.vmem %s2, %s156
          %s158 = smul.u32 8, %s22
        $region20: #{tpu_custom_call.1} parent=11 // pred_fallthru
          _
      $region12: #{tpu_custom_call.1} parent=5 // pred_fallthru
        _
      %p159 = scmp.lt.s32.totalorder %s12, 2
      // Predicated region
      $region21: #{tpu_custom_call.1} parent=5 // pred_check
        %p160 = pneg %p159
      $region22: #{tpu_custom_call.1} parent=5 // pred_check_branch
        %162 = sbr.rel (%p160) target = $region24
      $region23: #{tpu_custom_call.1} parent=5 // pred_region
        // Predicated region
        $region25: #{tpu_custom_call.1} parent=23 // pred_check
          %p163 = pneg %p44
        $region26: #{tpu_custom_call.1} parent=23 // pred_check_branch
          %165 = sbr.rel (%p163) target = $region28
        $region27: #{tpu_custom_call.1} parent=23 // pred_region
          %p166 = scmp.lt.s32.totalorder %s19, 1
          %s167 = scalar_select %p166, %s19, 1
          %s168 = smul.addr %s167, 8
          %s169 = scalar_lea.vmem %s0, %s168
        $region28: #{tpu_custom_call.1} parent=23 // pred_fallthru
          _
      $region24: #{tpu_custom_call.1} parent=5 // pred_fallthru
        _
      %p170 = scmp.le.s32.totalorder 1, %s12
      %p171 = scmp.lt.s32.totalorder %s12, 3
      %p172 = pnand %p170, %p171
      %p173 = pneg %p172
      // Predicated region
      $region29: #{tpu_custom_call.1} parent=5 // pred_check
        _
      $region30: #{tpu_custom_call.1} parent=5 // pred_check_branch
        %175 = sbr.rel (%p172) target = $region32
      $region31: #{tpu_custom_call.1} parent=5 // pred_region
        %s176 = ssub.s32 %s12, 1
        %p177 = scmp.lt.s32.totalorder %s21, 1
        %s178 = scalar_select %p177, %s21, 1
        %s179 = smul.addr %s178, 8
        %s180 = scalar_lea.vmem %s0, %s179
        %p181 = pneg %p50
        %p182 = pneg %p47
        %p183 = scmp.lt.s32.totalorder %s22, 0
        %s184 = scalar_select %p183, %s22, 0
        %s185 = smul.addr %s184, 8
        %s186 = scalar_lea.vmem %s1, %s185
        %p187 = pneg %p76
        %p188 = pneg %p73
        %s189 = smul.u32 8, %s22
        %p190 = scmp.lt.s32.totalorder %s189, 7
        %s191 = scalar_select %p190, %s189, 7
        %s192 = smul.addr %s191, 8
        %s193 = scalar_lea.vmem %s2, %s192
        %p194 = pneg %p102
        %p195 = pneg %p99
        %p196 = pneg %p128
        %p197 = pneg %p125
        %s198 = sand.u32 %s115, 1
        %s199 = scalar_lea.sflag [#allocation4], %s198
        %s200 = sand.u32 %s115, 1
        %s201 = smul.addr %s200, 8
        %s202 = scalar_lea.vmem [#allocation3], %s201
        %p203 = scmp.lt.s32.totalorder %s21, 1
        %s204 = scalar_select %p203, %s21, 1
        %s205 = smul.addr %s204, 8
        %s206 = scalar_lea.vmem %s0, %s205
        %p207 = scmp.lt.s32.totalorder %s22, 0
        %s208 = scalar_select %p207, %s22, 0
        %s209 = smul.addr %s208, 8
        %s210 = scalar_lea.vmem %s1, %s209
        %s211 = smul.u32 8, %s22
        %p212 = scmp.lt.s32.totalorder %s211, 7
        %s213 = scalar_select %p212, %s211, 7
        %s214 = smul.addr %s213, 8
        %s215 = scalar_lea.vmem %s2, %s214
        %s216 = smul.u32 8, %s22
        %p217 = scmp.eq.s32.totalorder %s22, 0
        // Predicated region
        $region33: #{tpu_custom_call.1} parent=31 // pred_check
          %p218 = pneg %p217
        $region34: #{tpu_custom_call.1} parent=31 // pred_check_branch
          %220 = sbr.rel (%p218) target = $region36
        $region35: #{tpu_custom_call.1} parent=31 // pred_region
          %vm221 = vcmask 261120
          %222 = vst.msk [vmem:[#allocation2] sm:$0xff] %vm221, 0.0
        $region36: #{tpu_custom_call.1} parent=31 // pred_fallthru
          _
        %v223 = vld [vmem:[%s206] sm:$0xff]
        %v224 = vld [vmem:[%s210] sm:$0xff]
        %v225 = vld [vmem:[%s210 + $0x8] sm:$0xff]
        %v226 = vld [vmem:[%s210 + $0x10] sm:$0xff]
        %v227 = vld [vmem:[%s210 + $0x18] sm:$0xff]
        %vm228 = vcmask 261120
        %v230 = vsel %vm228, %v223, 0
        %232 = vmatprep.subr.mxu0 0.0
        %233 = vmatpush1.msra.mxu0 %v224
        %234 = vmatprep.subr.mxu0 0.0
        %235 = vmatpush1.msra.mxu0 %v225
        %236 = vmatprep.subr.mxu0 0.0
        %237 = vmatpush1.msra.mxu0 %v226
        %238 = vmatprep.subr.mxu0 0.0
        %239 = vmatpush1.msra.mxu0 %v227
        %240 = vmatprep.subr.mxu0 0.0
        %241 = vmatpush1.msra.mxu0 0.0
        %242 = vmatprep.subr.mxu0 0.0
        %243 = vmatpush1.msra.mxu0 0.0
        %244 = vmatprep.subr.mxu0 0.0
        %245 = vmatpush1.msra.mxu0 0.0
        %246 = vmatprep.subr.mxu0 0.0
        %247 = vmatpush1.msra.mxu0 0.0
        %248 = vmatprep.subr.mxu0 0.0
        %249 = vmatpush1.msra.mxu0 0.0
        %250 = vmatprep.subr.mxu0 0.0
        %251 = vmatpush1.msra.mxu0 0.0
        %252 = vmatprep.subr.mxu0 0.0
        %253 = vmatpush1.msra.mxu0 0.0
        %254 = vmatprep.subr.mxu0 0.0
        %255 = vmatpush1.msra.mxu0 0.0
        %256 = vmatprep.subr.mxu0 0.0
        %257 = vmatpush1.msra.mxu0 0.0
        %258 = vmatprep.subr.mxu0 0.0
        %259 = vmatpush1.msra.mxu0 0.0
        %260 = vmatprep.subr.mxu0 0.0
        %261 = vmatpush1.msra.mxu0 0.0
        %262 = vmatprep.subr.mxu0 0.0
        %263 = vmatpush1.msra.mxu0 0.0
        %264 = vmatprep.subr.mxu0 0.0
        %265 = vmatpush1.msra.mxu0 0.0
        %266 = vmatprep.subr.mxu0 0.0
        %267 = vmatpush1.msra.mxu0 0.0
        %268 = vmatprep.subr.mxu0 0.0
        %269 = vmatpush1.msra.mxu0 0.0
        %270 = vmatprep.subr.mxu0 0.0
        %271 = vmatpush1.msra.mxu0 0.0
        %272 = vmatprep.subr.mxu0 0.0
        %273 = vmatpush1.msra.mxu0 0.0
        %274 = vmatprep.subr.mxu0 0.0
        %275 = vmatpush1.msra.mxu0 0.0
        %276 = vmatprep.subr.mxu0 0.0
        %277 = vmatpush1.msra.mxu0 0.0
        %278 = vmatprep.subr.mxu0 0.0
        %279 = vmatpush1.msra.mxu0 0.0
        %280 = vmatprep.subr.mxu0 0.0
        %281 = vmatpush1.msra.mxu0 0.0
        %282 = vmatprep.subr.mxu0 0.0
        %283 = vmatpush1.msra.mxu0 0.0
        %284 = vmatprep.subr.mxu0 0.0
        %285 = vmatpush1.msra.mxu0 0.0
        %286 = vmatprep.subr.mxu0 0.0
        %287 = vmatpush1.msra.mxu0 0.0
        %288 = vmatprep.subr.mxu0 0.0
        %289 = vmatpush1.msra.mxu0 0.0
        %290 = vmatprep.subr.mxu0 0.0
        %291 = vmatpush1.msra.mxu0 0.0
        %292 = vmatprep.subr.mxu0 0.0
        %293 = vmatpush1.msra.mxu0 0.0
        %294 = vmatprep.subr.mxu0 0.0
        %295 = vmatpush1.msra.mxu0 0.0
        %296 = vmatprep.mubr.f32.mxu0 0.0
        %297 = vmatmul.mubr.f32.gmra.mrb[0].mxu0 %v230
        %v298 = vpop.f32.mrb[0].mxu0
        %v299 = vadd.f32 0.0, %v298
        %v300 = vpop.f32.mrb[0].mxu0
        %301 = vdwg.mxu0
        %v302 = vxor.u32 %v299, 2147483648
        %v303 = vmul.f32 %v302, 1.442695
        %v304 = vpow.pop %v303
        %v305 = vadd.f32 %v304, 1.0
        %v306 = vrcp.pop %v305
        %v307 = vmul.f32 1.0, %v306
        %v308 = vmul.f32 %v299, %v307
        %310 = vrot.lane.b32.xlu0 %v299, 64
        %v311 = vpop.permute.xlu0 %310
        %v313 = vmul.f32 %v308, %v311
        %v314 = vld [vmem:[#allocation2] sm:$0xff]
        %v315 = vld [vmem:[%s215] sm:$0xff]
        %v316 = vld [vmem:[%s215 + $0x8] sm:$0xff]
        %v317 = vld [vmem:[%s215 + $0x10] sm:$0xff]
        %v318 = vld [vmem:[%s215 + $0x18] sm:$0xff]
        %v319 = vld [vmem:[%s215 + $0x20] sm:$0xff]
        %v320 = vld [vmem:[%s215 + $0x28] sm:$0xff]
        %v321 = vld [vmem:[%s215 + $0x30] sm:$0xff]
        %v322 = vld [vmem:[%s215 + $0x38] sm:$0xff]
        %vm323 = vcmask 523264
        %v325 = vsel %vm323, %v313, 0
        %327 = vmatprep.subr.mxu0 0.0
        %328 = vmatpush1.msra.mxu0 %v315
        %329 = vmatprep.subr.mxu0 0.0
        %330 = vmatpush1.msra.mxu0 %v316
        %331 = vmatprep.subr.mxu0 0.0
        %332 = vmatpush1.msra.mxu0 %v317
        %333 = vmatprep.subr.mxu0 0.0
        %334 = vmatpush1.msra.mxu0 %v318
        %335 = vmatprep.subr.mxu0 0.0
        %336 = vmatpush1.msra.mxu0 %v319
        %337 = vmatprep.subr.mxu0 0.0
        %338 = vmatpush1.msra.mxu0 %v320
        %339 = vmatprep.subr.mxu0 0.0
        %340 = vmatpush1.msra.mxu0 %v321
        %341 = vmatprep.subr.mxu0 0.0
        %342 = vmatpush1.msra.mxu0 %v322
        %343 = vmatprep.subr.mxu0 0.0
        %344 = vmatpush1.msra.mxu0 0.0
        %345 = vmatprep.subr.mxu0 0.0
        %346 = vmatpush1.msra.mxu0 0.0
        %347 = vmatprep.subr.mxu0 0.0
        %348 = vmatpush1.msra.mxu0 0.0
        %349 = vmatprep.subr.mxu0 0.0
        %350 = vmatpush1.msra.mxu0 0.0
        %351 = vmatprep.subr.mxu0 0.0
        %352 = vmatpush1.msra.mxu0 0.0
        %353 = vmatprep.subr.mxu0 0.0
        %354 = vmatpush1.msra.mxu0 0.0
        %355 = vmatprep.subr.mxu0 0.0
        %356 = vmatpush1.msra.mxu0 0.0
        %357 = vmatprep.subr.mxu0 0.0
        %358 = vmatpush1.msra.mxu0 0.0
        %359 = vmatprep.subr.mxu0 0.0
        %360 = vmatpush1.msra.mxu0 0.0
        %361 = vmatprep.subr.mxu0 0.0
        %362 = vmatpush1.msra.mxu0 0.0
        %363 = vmatprep.subr.mxu0 0.0
        %364 = vmatpush1.msra.mxu0 0.0
        %365 = vmatprep.subr.mxu0 0.0
        %366 = vmatpush1.msra.mxu0 0.0
        %367 = vmatprep.subr.mxu0 0.0
        %368 = vmatpush1.msra.mxu0 0.0
        %369 = vmatprep.subr.mxu0 0.0
        %370 = vmatpush1.msra.mxu0 0.0
        %371 = vmatprep.subr.mxu0 0.0
        %372 = vmatpush1.msra.mxu0 0.0
        %373 = vmatprep.subr.mxu0 0.0
        %374 = vmatpush1.msra.mxu0 0.0
        %375 = vmatprep.subr.mxu0 0.0
        %376 = vmatpush1.msra.mxu0 0.0
        %377 = vmatprep.subr.mxu0 0.0
        %378 = vmatpush1.msra.mxu0 0.0
        %379 = vmatprep.subr.mxu0 0.0
        %380 = vmatpush1.msra.mxu0 0.0
        %381 = vmatprep.subr.mxu0 0.0
        %382 = vmatpush1.msra.mxu0 0.0
        %383 = vmatprep.subr.mxu0 0.0
        %384 = vmatpush1.msra.mxu0 0.0
        %385 = vmatprep.subr.mxu0 0.0
        %386 = vmatpush1.msra.mxu0 0.0
        %387 = vmatprep.subr.mxu0 0.0
        %388 = vmatpush1.msra.mxu0 0.0
        %389 = vmatprep.subr.mxu0 0.0
        %390 = vmatpush1.msra.mxu0 0.0
        %391 = vmatprep.mubr.f32.mxu0 0.0
        %392 = vmatmul.mubr.f32.gmra.mrb[0].mxu0 %v325
        %v393 = vpop.f32.mrb[0].mxu0
        %v394 = vadd.f32 0.0, %v393
        %v395 = vpop.f32.mrb[0].mxu0
        %396 = vdwg.mxu0
        %v397 = vadd.f32 %v314, %v394
        %398 = vst.msk [vmem:[#allocation2] sm:$0xff] %vm228, %v397
        // Predicated region
        $region37: #{tpu_custom_call.1} parent=31 // pred_check
          %p399 = pneg %p217
        $region38: #{tpu_custom_call.1} parent=31 // pred_check_branch
          %401 = sbr.rel (%p399) target = $region40
        $region39: #{tpu_custom_call.1} parent=31 // pred_region
          %v402 = vld [vmem:[#allocation2] sm:$0xff]
          %403 = vst.msk [vmem:[%s202] sm:$0xff] %vm228, %v402
        $region40: #{tpu_custom_call.1} parent=31 // pred_fallthru
          _
        %s404 = sand.u32 %s115, 1
        %s405 = scalar_lea.sflag [#allocation4], %s404
        %s406 = sand.u32 %s115, 1
        %s407 = smul.addr %s406, 8
        %s408 = scalar_lea.vmem [#allocation3], %s407
        // Predicated region
        $region41: #{tpu_custom_call.1} parent=31 // pred_check
          %p409 = pneg %p125
        $region42: #{tpu_custom_call.1} parent=31 // pred_check_branch
          %411 = sbr.rel (%p409) target = $region44
        $region43: #{tpu_custom_call.1} parent=31 // pred_region
          %s413 = ssub.s32 128, 128
          %414 = vsyncadd %s405, %s413
          %s415 = smul.addr %s21, 128
          %s416 = scalar_lea.hbm %s3, %s415
          %s418 = sshll.u32 %s408, 4
          %s419 = int_to_ptr.vmem [resolvable:$true] %s418
          %421 = dma.vmem_to_hbm [thread:$0]  %s419, 128, %s416, %s405
        $region44: #{tpu_custom_call.1} parent=31 // pred_fallthru
          _
      $region32: #{tpu_custom_call.1} parent=5 // pred_fallthru
        _
      %p422 = scmp.le.s32.totalorder 2, %s12
      // Predicated region
      $region45: #{tpu_custom_call.1} parent=5 // pred_check
        %p423 = pneg %p422
      $region46: #{tpu_custom_call.1} parent=5 // pred_check_branch
        %425 = sbr.rel (%p423) target = $region48
      $region47: #{tpu_custom_call.1} parent=5 // pred_region
        %s426 = ssub.s32 %s12, 2
        // Predicated region
        $region49: #{tpu_custom_call.1} parent=47 // pred_check
          %p427 = pneg %p131
        $region50: #{tpu_custom_call.1} parent=47 // pred_check_branch
          %429 = sbr.rel (%p427) target = $region52
        $region51: #{tpu_custom_call.1} parent=47 // pred_region
          %s430 = sand.u32 %s116, 1
          %s431 = scalar_lea.sflag [#allocation4], %s430
          %s432 = sand.u32 %s116, 1
          %s433 = smul.addr %s432, 8
          %s434 = scalar_lea.vmem [#allocation3], %s433
          %435 = dma.done %s431, 128
        $region52: #{tpu_custom_call.1} parent=47 // pred_fallthru
          _
      $region48: #{tpu_custom_call.1} parent=5 // pred_fallthru
        _
    $region6: #{tpu_custom_call.1} parent=1 // loop_footer
      %s16 = sadd.s32 1, %s12
    $region7: #{tpu_custom_call.1} parent=1 // loop_footer_branch
      %11 = sbr.rel target = $region3
    $region8: #{tpu_custom_call.1} parent=1 // loop_exit
      _
    %436 = vsyncpa [#allocation4], 1
    %s437 = scalar_lea.sflag [#allocation4], 1
    %438 = vsyncpa %s437, 1

</llo_original>
